<compile_context>
chip_gen: v7x
topology: tpu7x:2x2x1
jax: 0.10.0
libtpu: 0.0.40
codegen_flags: <defaults>
</compile_context>

<pallas_src>
import functools

import jax
import jax.numpy as jnp
from jax import lax
from jax.experimental import pallas as pl
from jax.experimental.pallas import tpu as pltpu


def _sdpa_kernel(q_ref, k_ref, v_ref, o_ref, *, scale_factor, drop_mult):
    # One (batch, head) per grid step; refs are 2-D tiles.
    q = q_ref[...]                          # (S_q, D)   input dtype
    k = k_ref[...]                          # (S_k, D)
    v = v_ref[...]                          # (S_k, Dv)

    # Fold the score scale into Q: S_q*D multiplies instead of S_q*S_k.
    if scale_factor != 1.0:                 # trace-time constant
        q = q * jnp.asarray(scale_factor, dtype=q.dtype)

    # scores = q @ k^T, expressed directly as a contraction over the last
    # axes (no materialized transpose / XLU pass); f32 accumulation on MXU.
    s = lax.dot_general(q, k, (((1,), (1,)), ((), ())),
                        preferred_element_type=jnp.float32)

    # numerically-stable softmax over the key axis, in f32
    m = jnp.max(s, axis=-1, keepdims=True)
    e = jnp.exp(s - m)
    l = jnp.sum(e, axis=-1, keepdims=True)

    # exact per-row reciprocal (approx=True adds ~2^-12 rel. error); fold the
    # dropout inverse-keep scale into it so the (S_q, S_k) tile sees only one
    # VPU multiply.
    inv = pl.reciprocal(l, approx=False)
    if drop_mult != 1.0:                    # trace-time constant
        inv = inv * drop_mult
    probs = (e * inv).astype(v.dtype)

    # output = probs @ value; f32 accumulation, cast back to output dtype.
    o = jnp.dot(probs, v, preferred_element_type=jnp.float32)
    o_ref[...] = o.astype(o_ref.dtype)


def sdpa_pallas(query, key, value, scale_factor, dropout_p):
    """Pallas TPU implementation of Model.forward."""
    B, H, S_q, D = query.shape
    _, _, S_k, Dk = key.shape
    Dv = value.shape[-1]
    assert Dk == D and value.shape[2] == S_k

    # F.dropout with p >= 1 (training mode) drops every element: the output
    # is identically zero -- skip the whole QK^T/softmax/PV pipeline.
    if dropout_p >= 1.0:
        return jnp.zeros((B, H, S_q, Dv), dtype=query.dtype)

    if dropout_p == 0.0:
        drop_mult = 1.0
    else:
        # TODO(synk): stochastic Bernoulli masking for 0 < p < 1 would need
        # pltpu.prng_seed + pltpu.prng_random_bits; only the
        # expectation-preserving 1/(1-p) scaling is applied here.
        drop_mult = 1.0 / (1.0 - dropout_p)

    BH = B * H
    q = query.reshape(BH, S_q, D)
    k = key.reshape(BH, S_k, D)
    v = value.reshape(BH, S_k, Dv)

    kernel = functools.partial(
        _sdpa_kernel,
        scale_factor=float(scale_factor),
        drop_mult=float(drop_mult),
    )

    itemsize = jnp.dtype(query.dtype).itemsize
    cost = pl.CostEstimate(
        flops=2 * BH * S_q * S_k * (D + Dv),
        transcendentals=BH * S_q * S_k,
        bytes_accessed=(q.size + k.size + v.size + BH * S_q * Dv) * itemsize,
    )

    out = pl.pallas_call(
        kernel,
        out_shape=jax.ShapeDtypeStruct((BH, S_q, Dv), query.dtype),
        grid=(BH,),
        in_specs=[
            pl.BlockSpec((None, S_q, D), lambda b: (b, 0, 0)),
            pl.BlockSpec((None, S_k, D), lambda b: (b, 0, 0)),
            pl.BlockSpec((None, S_k, Dv), lambda b: (b, 0, 0)),
        ],
        out_specs=pl.BlockSpec((None, S_q, Dv), lambda b: (b, 0, 0)),
        compiler_params=pltpu.CompilerParams(
            # head/batch axis is independent -> shard across v7x's two TCs.
            dimension_semantics=("parallel",),
        ),
        cost_estimate=cost,
        # TODO(synk): for long sequences add a K-axis ("arbitrary") grid dim
        # with an online-softmax (flash) accumulator and generation-specific
        # tile sizes (smaller for v7x's 64 MiB VMEM, larger on v5e/v6e);
        # unnecessary at these tiny shapes.
    )(q, k, v)

    return out.reshape(B, H, S_q, Dv)


def sdpa_reference(query, key, value, scale_factor, dropout_p):
    """Pure-JAX reference mirroring the PyTorch forward."""
    qk = jnp.einsum("bhqd,bhkd->bhqk", query, key) * scale_factor
    p = jax.nn.softmax(qk, axis=-1)
    if dropout_p >= 1.0:
        p = jnp.zeros_like(p)
    elif dropout_p > 0.0:
        p = p / (1.0 - dropout_p)
    return jnp.einsum("bhqk,bhkv->bhqv", p, value)


if __name__ == "__main__":
    # Shapes consistent with the module's sample tensors (query head-dim made
    # to match key's contraction dim so the matmul is valid).
    B, H, S_q, S_k, D, Dv = 1, 4, 16, 32, 64, 128
    rng = jax.random.PRNGKey(0)
    kq, kk, kv = jax.random.split(rng, 3)
    query = jax.random.normal(kq, (B, H, S_q, D), dtype=jnp.float32)
    key = jax.random.normal(kk, (B, H, S_k, D), dtype=jnp.float32)
    value = jax.random.normal(kv, (B, H, S_k, Dv), dtype=jnp.float32)

    # Module's configured case: dropout_p = 1 -> output is identically zero
    # (short-circuited in the wrapper, no kernel work).
    scale_factor = 1
    dropout_p = 1
    out1 = jax.block_until_ready(
        sdpa_pallas(query, key, value, scale_factor, dropout_p))
    ref1 = sdpa_reference(query, key, value, scale_factor, dropout_p)
    assert out1.shape == (B, H, S_q, Dv)
    assert jnp.allclose(out1, ref1, atol=1e-6, rtol=1e-6)

    # Non-degenerate check that actually exercises the Pallas kernel
    # (p = 0, non-unit scale so the Q-folded scaling path is also tested).
    out0 = jax.block_until_ready(sdpa_pallas(query, key, value, 0.125, 0.0))
    ref0 = sdpa_reference(query, key, value, 0.125, 0.0)
    assert jnp.allclose(out0, ref0, atol=2e-3, rtol=2e-3)

    print("KERNEL_OK")
</pallas_src>

<mosaic_0001>
module attributes {stable_mosaic.version = 11 : i64} {
  func.func @_sdpa_kernel(%arg0: i32, %arg1: memref<1x16x64xf32, #tpu.memory_space<vmem>>, %arg2: memref<1x32x64xf32, #tpu.memory_space<vmem>>, %arg3: memref<1x32x128xf32, #tpu.memory_space<vmem>>, %arg4: memref<1x16x128xf32, #tpu.memory_space<vmem>>) attributes {dimension_semantics = [#tpu.dimension_semantics<parallel>], iteration_bounds = array<i64: 4>, scalar_prefetch = 0 : i64, scratch_operands = 0 : i64, tpu.core_type = #tpu.core_type<tc>, window_params = [{transform_indices = @transform_0, window_bounds = array<i64: 1, 16, 64>}, {transform_indices = @transform_1, window_bounds = array<i64: 1, 32, 64>}, {transform_indices = @transform_2, window_bounds = array<i64: 1, 32, 128>}, {transform_indices = @transform_3, window_bounds = array<i64: 1, 16, 128>}]} {
    %c0 = arith.constant 0 : index
    %c0_0 = arith.constant 0 : index
    %c0_1 = arith.constant 0 : index
    %0 = vector.load %arg1[%c0, %c0_0, %c0_1] : memref<1x16x64xf32, #tpu.memory_space<vmem>>, vector<1x16x64xf32>
    %1 = vector.shape_cast %0 : vector<1x16x64xf32> to vector<16x64xf32>
    %c0_2 = arith.constant 0 : index
    %c0_3 = arith.constant 0 : index
    %c0_4 = arith.constant 0 : index
    %2 = vector.load %arg2[%c0_2, %c0_3, %c0_4] : memref<1x32x64xf32, #tpu.memory_space<vmem>>, vector<1x32x64xf32>
    %3 = vector.shape_cast %2 : vector<1x32x64xf32> to vector<32x64xf32>
    %c0_5 = arith.constant 0 : index
    %c0_6 = arith.constant 0 : index
    %c0_7 = arith.constant 0 : index
    %4 = vector.load %arg3[%c0_5, %c0_6, %c0_7] : memref<1x32x128xf32, #tpu.memory_space<vmem>>, vector<1x32x128xf32>
    %5 = vector.shape_cast %4 : vector<1x32x128xf32> to vector<32x128xf32>
    %cst = arith.constant 1.250000e-01 : f32
    %6 = vector.broadcast %cst : f32 to vector<16x64xf32>
    %7 = arith.mulf %1, %6 : vector<16x64xf32>
    %cst_8 = arith.constant dense<0.000000e+00> : vector<16x32xf32>
    %8 = tpu.matmul %7, %3, %cst_8 {dimension_numbers = #tpu.dot_dimension_numbers<[1], [1], [0], [0], [0, 0, 1, 0], [], []>} : vector<16x64xf32>, vector<32x64xf32>, vector<16x32xf32> -> vector<16x32xf32>
    %cst_9 = arith.constant dense<0xFF800000> : vector<16xf32>
    %9 = vector.multi_reduction <maximumf>, %8, %cst_9 [1] : vector<16x32xf32> to vector<16xf32>
    %10 = vector.shape_cast %9 : vector<16xf32> to vector<16x1xf32>
    %11 = vector.broadcast %10 : vector<16x1xf32> to vector<16x32xf32>
    %12 = arith.subf %8, %11 : vector<16x32xf32>
    %13 = math.exp %12 : vector<16x32xf32>
    %cst_10 = arith.constant dense<0.000000e+00> : vector<16xf32>
    %14 = vector.multi_reduction <add>, %13, %cst_10 [1] : vector<16x32xf32> to vector<16xf32>
    %15 = vector.shape_cast %14 : vector<16xf32> to vector<16x1xf32>
    %16 = tpu.reciprocal %15 : vector<16x1xf32> -> vector<16x1xf32>
    %17 = vector.broadcast %16 : vector<16x1xf32> to vector<16x32xf32>
    %18 = arith.mulf %13, %17 : vector<16x32xf32>
    %cst_11 = arith.constant dense<0.000000e+00> : vector<16x128xf32>
    %19 = tpu.matmul %18, %5, %cst_11 {dimension_numbers = #tpu.dot_dimension_numbers<[1], [0], [0], [1], [0, 0, 1, 1], [], []>} : vector<16x32xf32>, vector<32x128xf32>, vector<16x128xf32> -> vector<16x128xf32>
    %c0_12 = arith.constant 0 : index
    %c0_13 = arith.constant 0 : index
    %c0_14 = arith.constant 0 : index
    %20 = vector.load %arg4[%c0_12, %c0_13, %c0_14] : memref<1x16x128xf32, #tpu.memory_space<vmem>>, vector<1x16x128xf32>
    %21 = vector.shape_cast %20 : vector<1x16x128xf32> to vector<16x128xf32>
    %22 = vector.shape_cast %19 : vector<16x128xf32> to vector<1x16x128xf32>
    tpu.vector_store %arg4[%c0_12, %c0_13, %c0_14], %22 {strides = array<i32>} : memref<1x16x128xf32, #tpu.memory_space<vmem>>, vector<1x16x128xf32>,
    return
  }
  func.func @transform_0(%arg0: i32) -> (i32, i32, i32) {
    %c0_i32 = arith.constant 0 : i32
    %c0_i32_0 = arith.constant 0 : i32
    %c0_i32_1 = arith.constant 0 : i32
    return %arg0, %c0_i32, %c0_i32_0 : i32, i32, i32
  }
  func.func @transform_1(%arg0: i32) -> (i32, i32, i32) {
    %c0_i32 = arith.constant 0 : i32
    %c0_i32_0 = arith.constant 0 : i32
    %c0_i32_1 = arith.constant 0 : i32
    return %arg0, %c0_i32, %c0_i32_0 : i32, i32, i32
  }
  func.func @transform_2(%arg0: i32) -> (i32, i32, i32) {
    %c0_i32 = arith.constant 0 : i32
    %c0_i32_0 = arith.constant 0 : i32
    %c0_i32_1 = arith.constant 0 : i32
    return %arg0, %c0_i32, %c0_i32_0 : i32, i32, i32
  }
  func.func @transform_3(%arg0: i32) -> (i32, i32, i32) {
    %c0_i32 = arith.constant 0 : i32
    %c0_i32_0 = arith.constant 0 : i32
    %c0_i32_1 = arith.constant 0 : i32
    return %arg0, %c0_i32, %c0_i32_0 : i32, i32, i32
  }
}

</mosaic_0001>

<llo_original>
// kernel: tpu_custom_call.1
$region0: #{tpu_custom_call.1}
  #allocation0 [shape = 'u32[]', space=smem, size = 0x4, offset = 0x4, fixed_abs, tag = 'smem constant byte address 0x4 - core index']
  #allocation1 [shape = 'u32[144,128]{1,0:T(1,128)}', space=vmem, size = 0x12000, scoped, tag = 'internal scratch']
  %s0 = inlined_call_operand.hbm [shape: f32[4,16,64], index: 0, kind: input, shape index: {}]
  %s1 = inlined_call_operand.hbm [shape: f32[4,32,64], index: 1, kind: input, shape index: {}]
  %s2 = inlined_call_operand.hbm [shape: f32[4,32,128], index: 2, kind: input, shape index: {}]
  %s3 = inlined_call_operand.hbm [shape: f32[4,16,128], index: 3, kind: output, shape index: {}]
  %s4 = sld [smem:[#allocation0]]
  $region57: #{tpu_custom_call.1} parent=0
    _
  %s6 = ssub.s32 1, %s4
  %s7 = scalar_select 0, %s6, %s4
  $region1: #{tpu_custom_call.1} parent=0
    #allocation2 [shape = 'u8[16384]{0}', space=vmem, size = 0x4000, scoped, tag = 'input window, operand 0']
    #allocation3 [shape = 's32[2]{0}', space=sflag, size = 0x8, scoped, tag = 'scoped memory for tpu_custom_call.1']
    #allocation4 [shape = 's32[2]{0}', space=sflag, size = 0x8, scoped, tag = 'scoped memory for tpu_custom_call.1']
    #allocation5 [shape = 'u8[32768]{0}', space=vmem, size = 0x8000, scoped, tag = 'input window, operand 1']
    #allocation6 [shape = 's32[2]{0}', space=sflag, size = 0x8, scoped, tag = 'scoped memory for tpu_custom_call.1']
    #allocation7 [shape = 'u8[32768]{0}', space=vmem, size = 0x8000, scoped, tag = 'input window, operand 2']
    #allocation8 [shape = 'u8[16384]{0}', space=vmem, size = 0x4000, scoped, tag = 'output window, operand 0']
    %8 = vsyncpa [#allocation3], 0
    %s9 = scalar_lea.sflag [#allocation3], 1
    %10 = vsyncpa %s9, 0
    %11 = vsyncpa [#allocation6], 0
    %s12 = scalar_lea.sflag [#allocation6], 1
    %13 = vsyncpa %s12, 0
    %14 = vsyncpa [#allocation4], 0
    %s15 = scalar_lea.sflag [#allocation4], 1
    %16 = vsyncpa %s15, 0
    loop: start=0, step=1, limit=6
    $region2: #{tpu_custom_call.1} parent=1 // loop_pre_header
      _
    $region3: #{tpu_custom_call.1} parent=1 // loop_header
      %s18 = sphi 0, %s22
      %p19 = scmp.ge.s32.totalorder %s18, 6
      %s28 = sphi 0, %s30
      %s31 = sphi 0, %s28
      %s32 = sphi 0, %s31
      %s48 = sphi 0, %s32
      %s54 = sphi 0, %s56
      %s57 = sphi 0, %s54
      %s58 = sphi 0, %s57
      %s74 = sphi 0, %s58
      %s80 = sphi 0, %s82
      %s83 = sphi 0, %s80
      %s84 = sphi 0, %s83
      %s100 = sphi 0, %s84
      %s106 = sphi 0, %s108
      %s109 = sphi 0, %s106
      %s110 = sphi 0, %s109
      %s126 = sphi 0, %s110
    $region4: #{tpu_custom_call.1} parent=1 // loop_header_branch
      %21 = sbr.rel (%p19) target = $region8
    $region5: #{tpu_custom_call.1} parent=1 // loop_body
      %s23 = ssub.s32 %s18, 1
      %s24 = ssub.s32 %s18, 2
      %s25 = sadd.s32 %s18, 1
      %s26 = ssub.s32 %s18, %s25
      %p27 = scmp.eq.s32.totalorder %s26, 0
      %s29 = sadd.s32 %s28, 1
      %s30 = scalar_select %p27, %s28, %s29
      %p33 = pneg %p27
      %p34 = scmp.eq.s32.totalorder %s18, 3
      %p35 = por %p33, %p34
      %p36 = scmp.ne.s32.totalorder %s28, %s31
      %p37 = scmp.eq.s32.totalorder %s18, 0
      %p38 = por %p36, %p37
      %p39 = scmp.ne.s32.totalorder %s28, %s31
      %p40 = scmp.eq.s32.totalorder %s23, 3
      %p41 = por %p39, %p40
      %p42 = scmp.ne.s32.totalorder %s31, %s32
      %p43 = scmp.eq.s32.totalorder %s23, 0
      %p44 = por %p42, %p43
      %p45 = scmp.ne.s32.totalorder %s31, %s32
      %p46 = scmp.eq.s32.totalorder %s24, 3
      %p47 = por %p45, %p46
      %p49 = scmp.ne.s32.totalorder %s32, %s48
      %p50 = scmp.eq.s32.totalorder %s24, 0
      %p51 = por %p49, %p50
      %s52 = ssub.s32 %s18, %s25
      %p53 = scmp.eq.s32.totalorder %s52, 0
      %s55 = sadd.s32 %s54, 1
      %s56 = scalar_select %p53, %s54, %s55
      %p59 = pneg %p53
      %p60 = scmp.eq.s32.totalorder %s18, 3
      %p61 = por %p59, %p60
      %p62 = scmp.ne.s32.totalorder %s54, %s57
      %p63 = scmp.eq.s32.totalorder %s18, 0
      %p64 = por %p62, %p63
      %p65 = scmp.ne.s32.totalorder %s54, %s57
      %p66 = scmp.eq.s32.totalorder %s23, 3
      %p67 = por %p65, %p66
      %p68 = scmp.ne.s32.totalorder %s57, %s58
      %p69 = scmp.eq.s32.totalorder %s23, 0
      %p70 = por %p68, %p69
      %p71 = scmp.ne.s32.totalorder %s57, %s58
      %p72 = scmp.eq.s32.totalorder %s24, 3
      %p73 = por %p71, %p72
      %p75 = scmp.ne.s32.totalorder %s58, %s74
      %p76 = scmp.eq.s32.totalorder %s24, 0
      %p77 = por %p75, %p76
      %s78 = ssub.s32 %s18, %s25
      %p79 = scmp.eq.s32.totalorder %s78, 0
      %s81 = sadd.s32 %s80, 1
      %s82 = scalar_select %p79, %s80, %s81
      %p85 = pneg %p79
      %p86 = scmp.eq.s32.totalorder %s18, 3
      %p87 = por %p85, %p86
      %p88 = scmp.ne.s32.totalorder %s80, %s83
      %p89 = scmp.eq.s32.totalorder %s18, 0
      %p90 = por %p88, %p89
      %p91 = scmp.ne.s32.totalorder %s80, %s83
      %p92 = scmp.eq.s32.totalorder %s23, 3
      %p93 = por %p91, %p92
      %p94 = scmp.ne.s32.totalorder %s83, %s84
      %p95 = scmp.eq.s32.totalorder %s23, 0
      %p96 = por %p94, %p95
      %p97 = scmp.ne.s32.totalorder %s83, %s84
      %p98 = scmp.eq.s32.totalorder %s24, 3
      %p99 = por %p97, %p98
      %p101 = scmp.ne.s32.totalorder %s84, %s100
      %p102 = scmp.eq.s32.totalorder %s24, 0
      %p103 = por %p101, %p102
      %s104 = ssub.s32 %s18, %s25
      %p105 = scmp.eq.s32.totalorder %s104, 0
      %s107 = sadd.s32 %s106, 1
      %s108 = scalar_select %p105, %s106, %s107
      %p111 = pneg %p105
      %p112 = scmp.eq.s32.totalorder %s18, 3
      %p113 = por %p111, %p112
      %p114 = scmp.ne.s32.totalorder %s106, %s109
      %p115 = scmp.eq.s32.totalorder %s18, 0
      %p116 = por %p114, %p115
      %p117 = scmp.ne.s32.totalorder %s106, %s109
      %p118 = scmp.eq.s32.totalorder %s23, 3
      %p119 = por %p117, %p118
      %p120 = scmp.ne.s32.totalorder %s109, %s110
      %p121 = scmp.eq.s32.totalorder %s23, 0
      %p122 = por %p120, %p121
      %p123 = scmp.ne.s32.totalorder %s109, %s110
      %p124 = scmp.eq.s32.totalorder %s24, 3
      %p125 = por %p123, %p124
      %p127 = scmp.ne.s32.totalorder %s110, %s126
      %p128 = scmp.eq.s32.totalorder %s24, 0
      %p129 = por %p127, %p128
      %p130 = scmp.le.s32.totalorder 1, %s18
      %p131 = scmp.lt.s32.totalorder %s18, 5
      %p132 = pnand %p130, %p131
      %p133 = pneg %p132
      // Predicated region
      $region9: #{tpu_custom_call.1} parent=5 // pred_check
        _
      $region10: #{tpu_custom_call.1} parent=5 // pred_check_branch
        %135 = sbr.rel (%p132) target = $region12
      $region11: #{tpu_custom_call.1} parent=5 // pred_region
        %s136 = ssub.s32 %s18, 1
      $region12: #{tpu_custom_call.1} parent=5 // pred_fallthru
        _
      %p137 = scmp.lt.s32.totalorder %s18, 4
      // Predicated region
      $region13: #{tpu_custom_call.1} parent=5 // pred_check
        %p138 = pneg %p137
      $region14: #{tpu_custom_call.1} parent=5 // pred_check_branch
        %140 = sbr.rel (%p138) target = $region16
      $region15: #{tpu_custom_call.1} parent=5 // pred_region
        // Predicated region
        $region17: #{tpu_custom_call.1} parent=15 // pred_check
          %p141 = pneg %p38
        $region18: #{tpu_custom_call.1} parent=15 // pred_check_branch
          %143 = sbr.rel (%p141) target = $region20
        $region19: #{tpu_custom_call.1} parent=15 // pred_region
          %s144 = sand.u32 %s28, 1
          %s145 = scalar_lea.sflag [#allocation3], %s144
          %s146 = sand.u32 %s28, 1
          %s147 = smul.addr %s146, 16
          %s148 = scalar_lea.vmem [#allocation2], %s147
          %s150 = ssub.s32 256, 256
          %151 = vsyncadd %s145, %s150
          %s152 = smul.addr %s18, 2
          %s153 = smul.addr %s152, 128
          %s154 = scalar_lea.hbm %s0, %s153
          %s155 = sshll.u32 %s148, 4
          %s156 = int_to_ptr.vmem [resolvable:$true] %s155
          %161 = dma.hbm_to_vmem [thread:$0]  %s154, 256, %s156, %s145, 128, 128, 8
        $region20: #{tpu_custom_call.1} parent=15 // pred_fallthru
          _
        // Predicated region
        $region21: #{tpu_custom_call.1} parent=15 // pred_check
          %p162 = pneg %p64
        $region22: #{tpu_custom_call.1} parent=15 // pred_check_branch
          %164 = sbr.rel (%p162) target = $region24
        $region23: #{tpu_custom_call.1} parent=15 // pred_region
          %s165 = sand.u32 %s18, 1
          %s166 = scalar_lea.sflag [#allocation6], %s165
          %s167 = sand.u32 %s54, 1
          %s168 = smul.addr %s167, 32
          %s169 = scalar_lea.vmem [#allocation5], %s168
          %s171 = ssub.s32 512, 512
          %172 = vsyncadd %s166, %s171
          %s173 = smul.addr %s18, 4
          %s174 = smul.addr %s173, 128
          %s175 = scalar_lea.hbm %s1, %s174
          %s176 = sshll.u32 %s169, 4
          %s177 = int_to_ptr.vmem [resolvable:$true] %s176
          %182 = dma.hbm_to_vmem [thread:$0]  %s175, 512, %s177, %s166, 128, 128, 8
        $region24: #{tpu_custom_call.1} parent=15 // pred_fallthru
          _
        // Predicated region
        $region25: #{tpu_custom_call.1} parent=15 // pred_check
          %p183 = pneg %p90
        $region26: #{tpu_custom_call.1} parent=15 // pred_check_branch
          %185 = sbr.rel (%p183) target = $region28
        $region27: #{tpu_custom_call.1} parent=15 // pred_region
          %s186 = sand.u32 %s18, 1
          %s187 = scalar_lea.sflag [#allocation6], %s186
          %s188 = sand.u32 %s80, 1
          %s189 = smul.addr %s188, 32
          %s190 = scalar_lea.vmem [#allocation7], %s189
          %s192 = ssub.s32 512, 512
          %193 = vsyncadd %s187, %s192
          %s194 = smul.addr %s18, 4
          %s195 = smul.addr %s194, 128
          %s196 = scalar_lea.hbm %s2, %s195
          %s197 = sshll.u32 %s190, 4
          %s198 = int_to_ptr.vmem [resolvable:$true] %s197
          %203 = dma.hbm_to_vmem [thread:$0]  %s196, 512, %s198, %s187, 128, 128, 8
        $region28: #{tpu_custom_call.1} parent=15 // pred_fallthru
          _
      $region16: #{tpu_custom_call.1} parent=5 // pred_fallthru
        _
      %p204 = scmp.le.s32.totalorder 1, %s18
      %p205 = scmp.lt.s32.totalorder %s18, 5
      %p206 = pnand %p204, %p205
      %p207 = pneg %p206
      // Predicated region
      $region29: #{tpu_custom_call.1} parent=5 // pred_check
        _
      $region30: #{tpu_custom_call.1} parent=5 // pred_check_branch
        %209 = sbr.rel (%p206) target = $region32
      $region31: #{tpu_custom_call.1} parent=5 // pred_region
        %s210 = ssub.s32 %s18, 1
        %s211 = sand.u32 %s31, 1
        %s212 = scalar_lea.sflag [#allocation3], %s211
        %s213 = sand.u32 %s31, 1
        %s214 = smul.addr %s213, 16
        %s215 = scalar_lea.vmem [#allocation2], %s214
        // Predicated region
        $region33: #{tpu_custom_call.1} parent=31 // pred_check
          %p216 = pneg %p44
        $region34: #{tpu_custom_call.1} parent=31 // pred_check_branch
          %218 = sbr.rel (%p216) target = $region36
        $region35: #{tpu_custom_call.1} parent=31 // pred_region
          %219 = dma.done %s212, 256
        $region36: #{tpu_custom_call.1} parent=31 // pred_fallthru
          _
        %s220 = sand.u32 %s23, 1
        %s221 = scalar_lea.sflag [#allocation6], %s220
        %s222 = sand.u32 %s57, 1
        %s223 = smul.addr %s222, 32
        %s224 = scalar_lea.vmem [#allocation5], %s223
        // Predicated region
        $region37: #{tpu_custom_call.1} parent=31 // pred_check
          %p225 = pneg %p70
        $region38: #{tpu_custom_call.1} parent=31 // pred_check_branch
          %227 = sbr.rel (%p225) target = $region40
        $region39: #{tpu_custom_call.1} parent=31 // pred_region
          %228 = dma.done %s221, 512
        $region40: #{tpu_custom_call.1} parent=31 // pred_fallthru
          _
        %s229 = sand.u32 %s23, 1
        %s230 = scalar_lea.sflag [#allocation6], %s229
        %s231 = sand.u32 %s83, 1
        %s232 = smul.addr %s231, 32
        %s233 = scalar_lea.vmem [#allocation7], %s232
        // Predicated region
        $region41: #{tpu_custom_call.1} parent=31 // pred_check
          %p234 = pneg %p96
        $region42: #{tpu_custom_call.1} parent=31 // pred_check_branch
          %236 = sbr.rel (%p234) target = $region44
        $region43: #{tpu_custom_call.1} parent=31 // pred_region
          %237 = dma.done %s230, 512
        $region44: #{tpu_custom_call.1} parent=31 // pred_fallthru
          _
        %s238 = sand.u32 %s31, 1
        %s239 = scalar_lea.sflag [#allocation3], %s238
        %s240 = sand.u32 %s31, 1
        %s241 = smul.addr %s240, 16
        %s242 = scalar_lea.vmem [#allocation2], %s241
        %p243 = pneg %p44
        %p244 = pneg %p41
        %s245 = sand.u32 %s23, 1
        %s246 = scalar_lea.sflag [#allocation6], %s245
        %s247 = sand.u32 %s57, 1
        %s248 = smul.addr %s247, 32
        %s249 = scalar_lea.vmem [#allocation5], %s248
        %p250 = pneg %p70
        %p251 = pneg %p67
        %s252 = sand.u32 %s23, 1
        %s253 = scalar_lea.sflag [#allocation6], %s252
        %s254 = sand.u32 %s83, 1
        %s255 = smul.addr %s254, 32
        %s256 = scalar_lea.vmem [#allocation7], %s255
        %p257 = pneg %p96
        %p258 = pneg %p93
        %p259 = pneg %p122
        %p260 = pneg %p119
        %s261 = sand.u32 %s109, 1
        %s262 = scalar_lea.sflag [#allocation4], %s261
        %s263 = sand.u32 %s109, 1
        %s264 = smul.addr %s263, 16
        %s265 = scalar_lea.vmem [#allocation8], %s264
        %v266 = vld [vmem:[%s215] sm:$0xff]
        %v267 = vld [vmem:[%s215 + $0x8] sm:$0xff]
        %v268 = vld [vmem:[%s224] sm:$0xff]
        %v269 = vld [vmem:[%s224 + $0x8] sm:$0xff]
        %v270 = vld [vmem:[%s224 + $0x10] sm:$0xff]
        %v271 = vld [vmem:[%s224 + $0x18] sm:$0xff]
        %v272 = vld [vmem:[%s233] sm:$0xff]
        %v273 = vld [vmem:[%s233 + $0x8] sm:$0xff]
        %v274 = vld [vmem:[%s233 + $0x10] sm:$0xff]
        %v275 = vld [vmem:[%s233 + $0x18] sm:$0xff]
        %v276 = vmul.f32 %v266, 0.125
        %v277 = vmul.f32 %v267, 0.125
        %vm278 = vcmask 523264
        %v280 = vsel %vm278, %v276, 0
        %v283 = vsel %vm278, %v277, 0
        %v286 = vsel %vm278, %v268, 0
        %v289 = vsel %vm278, %v269, 0
        %v292 = vsel %vm278, %v270, 0
        %v295 = vsel %vm278, %v271, 0
        %297 = vmatprep.subr.mxu0 0.0
        %298 = vmatpush1.xpose.msra.mxu0 %v286
        %299 = vmatprep.subr.mxu0 0.0
        %300 = vmatpush1.xpose.msra.mxu0 %v289
        %301 = vmatprep.subr.mxu0 0.0
        %302 = vmatpush1.xpose.msra.mxu0 %v292
        %303 = vmatprep.subr.mxu0 0.0
        %304 = vmatpush1.xpose.msra.mxu0 %v295
        %305 = vmatprep.subr.mxu0 0.0
        %306 = vmatpush1.xpose.msra.mxu0 0.0
        %307 = vmatprep.subr.mxu0 0.0
        %308 = vmatpush1.xpose.msra.mxu0 0.0
        %309 = vmatprep.subr.mxu0 0.0
        %310 = vmatpush1.xpose.msra.mxu0 0.0
        %311 = vmatprep.subr.mxu0 0.0
        %312 = vmatpush1.xpose.msra.mxu0 0.0
        %313 = vmatprep.subr.mxu0 0.0
        %314 = vmatpush1.xpose.msra.mxu0 0.0
        %315 = vmatprep.subr.mxu0 0.0
        %316 = vmatpush1.xpose.msra.mxu0 0.0
        %317 = vmatprep.subr.mxu0 0.0
        %318 = vmatpush1.xpose.msra.mxu0 0.0
        %319 = vmatprep.subr.mxu0 0.0
        %320 = vmatpush1.xpose.msra.mxu0 0.0
        %321 = vmatprep.subr.mxu0 0.0
        %322 = vmatpush1.xpose.msra.mxu0 0.0
        %323 = vmatprep.subr.mxu0 0.0
        %324 = vmatpush1.xpose.msra.mxu0 0.0
        %325 = vmatprep.subr.mxu0 0.0
        %326 = vmatpush1.xpose.msra.mxu0 0.0
        %327 = vmatprep.subr.mxu0 0.0
        %328 = vmatpush1.xpose.msra.mxu0 0.0
        %329 = vmatprep.subr.mxu0 0.0
        %330 = vmatpush1.xpose.msra.mxu0 0.0
        %331 = vmatprep.subr.mxu0 0.0
        %332 = vmatpush1.xpose.msra.mxu0 0.0
        %333 = vmatprep.subr.mxu0 0.0
        %334 = vmatpush1.xpose.msra.mxu0 0.0
        %335 = vmatprep.subr.mxu0 0.0
        %336 = vmatpush1.xpose.msra.mxu0 0.0
        %337 = vmatprep.subr.mxu0 0.0
        %338 = vmatpush1.xpose.msra.mxu0 0.0
        %339 = vmatprep.subr.mxu0 0.0
        %340 = vmatpush1.xpose.msra.mxu0 0.0
        %341 = vmatprep.subr.mxu0 0.0
        %342 = vmatpush1.xpose.msra.mxu0 0.0
        %343 = vmatprep.subr.mxu0 0.0
        %344 = vmatpush1.xpose.msra.mxu0 0.0
        %345 = vmatprep.subr.mxu0 0.0
        %346 = vmatpush1.xpose.msra.mxu0 0.0
        %347 = vmatprep.subr.mxu0 0.0
        %348 = vmatpush1.xpose.msra.mxu0 0.0
        %349 = vmatprep.subr.mxu0 0.0
        %350 = vmatpush1.xpose.msra.mxu0 0.0
        %351 = vmatprep.subr.mxu0 0.0
        %352 = vmatpush1.xpose.msra.mxu0 0.0
        %353 = vmatprep.subr.mxu0 0.0
        %354 = vmatpush1.xpose.msra.mxu0 0.0
        %355 = vmatprep.subr.mxu0 0.0
        %356 = vmatpush1.xpose.msra.mxu0 0.0
        %357 = vmatprep.subr.mxu0 0.0
        %358 = vmatpush1.xpose.msra.mxu0 0.0
        %359 = vmatprep.subr.mxu0 0.0
        %360 = vmatpush1.xpose.msra.mxu0 0.0
        %361 = vmatprep.mubr.f32.mxu0 0.0
        %362 = vmatmul.mubr.f32.gmra.mrb[0].mxu0 %v280
        %v363 = vpop.f32.mrb[0].mxu0
        %v364 = vadd.f32 0.0, %v363
        %v365 = vpop.f32.mrb[0].mxu0
        %366 = vmatprep.mubr.f32.mxu0 0.0
        %367 = vmatmul.mubr.f32.gmra.mrb[0].mxu0 %v283
        %v368 = vpop.f32.mrb[0].mxu0
        %v369 = vadd.f32 0.0, %v368
        %v370 = vpop.f32.mrb[0].mxu0
        %371 = vdwg.mxu0
        %vm372 = vcmask 261120
        %v373 = vsel %vm372, %v364, -inf
        %374 = vmax.xlane.f32.xlu0 %v373
        %v375 = vpop.xlane.xlu0 %374
        %v376 = vsel %vm372, %v369, -inf
        %377 = vmax.xlane.f32.xlu0 %v376
        %v378 = vpop.xlane.xlu0 %377
        %v379 = vsub.f32 %v364, %v375
        %v380 = vsub.f32 %v369, %v378
        %v381 = vmul.f32 %v379, 1.442695
        %v382 = vpow.pop %v381
        %v383 = vmul.f32 %v380, 1.442695
        %v384 = vpow.pop %v383
        %v385 = vsel %vm372, %v382, 0.0
        %386 = vadd.xlane.f32.xlu0 %v385
        %v387 = vpop.xlane.xlu0 %386
        %v388 = vsel %vm372, %v384, 0.0
        %389 = vadd.xlane.f32.xlu0 %v388
        %v390 = vpop.xlane.xlu0 %389
        %v391 = vrcp.pop %v387
        %v392 = vrcp.pop %v390
        %v393 = vmul.f32 %v382, %v391
        %v394 = vmul.f32 %v384, %v392
        %v396 = vsel %vm372, %v393, 0
        %v399 = vsel %vm372, %v394, 0
        %401 = vmatprep.subr.mxu0 0.0
        %402 = vmatpush1.msra.mxu0 %v272
        %403 = vmatprep.subr.mxu0 0.0
        %404 = vmatpush1.msra.mxu0 %v273
        %405 = vmatprep.subr.mxu0 0.0
        %406 = vmatpush1.msra.mxu0 %v274
        %407 = vmatprep.subr.mxu0 0.0
        %408 = vmatpush1.msra.mxu0 %v275
        %409 = vmatprep.subr.mxu0 0.0
        %410 = vmatpush1.msra.mxu0 0.0
        %411 = vmatprep.subr.mxu0 0.0
        %412 = vmatpush1.msra.mxu0 0.0
        %413 = vmatprep.subr.mxu0 0.0
        %414 = vmatpush1.msra.mxu0 0.0
        %415 = vmatprep.subr.mxu0 0.0
        %416 = vmatpush1.msra.mxu0 0.0
        %417 = vmatprep.subr.mxu0 0.0
        %418 = vmatpush1.msra.mxu0 0.0
        %419 = vmatprep.subr.mxu0 0.0
        %420 = vmatpush1.msra.mxu0 0.0
        %421 = vmatprep.subr.mxu0 0.0
        %422 = vmatpush1.msra.mxu0 0.0
        %423 = vmatprep.subr.mxu0 0.0
        %424 = vmatpush1.msra.mxu0 0.0
        %425 = vmatprep.subr.mxu0 0.0
        %426 = vmatpush1.msra.mxu0 0.0
        %427 = vmatprep.subr.mxu0 0.0
        %428 = vmatpush1.msra.mxu0 0.0
        %429 = vmatprep.subr.mxu0 0.0
        %430 = vmatpush1.msra.mxu0 0.0
        %431 = vmatprep.subr.mxu0 0.0
        %432 = vmatpush1.msra.mxu0 0.0
        %433 = vmatprep.subr.mxu0 0.0
        %434 = vmatpush1.msra.mxu0 0.0
        %435 = vmatprep.subr.mxu0 0.0
        %436 = vmatpush1.msra.mxu0 0.0
        %437 = vmatprep.subr.mxu0 0.0
        %438 = vmatpush1.msra.mxu0 0.0
        %439 = vmatprep.subr.mxu0 0.0
        %440 = vmatpush1.msra.mxu0 0.0
        %441 = vmatprep.subr.mxu0 0.0
        %442 = vmatpush1.msra.mxu0 0.0
        %443 = vmatprep.subr.mxu0 0.0
        %444 = vmatpush1.msra.mxu0 0.0
        %445 = vmatprep.subr.mxu0 0.0
        %446 = vmatpush1.msra.mxu0 0.0
        %447 = vmatprep.subr.mxu0 0.0
        %448 = vmatpush1.msra.mxu0 0.0
        %449 = vmatprep.subr.mxu0 0.0
        %450 = vmatpush1.msra.mxu0 0.0
        %451 = vmatprep.subr.mxu0 0.0
        %452 = vmatpush1.msra.mxu0 0.0
        %453 = vmatprep.subr.mxu0 0.0
        %454 = vmatpush1.msra.mxu0 0.0
        %455 = vmatprep.subr.mxu0 0.0
        %456 = vmatpush1.msra.mxu0 0.0
        %457 = vmatprep.subr.mxu0 0.0
        %458 = vmatpush1.msra.mxu0 0.0
        %459 = vmatprep.subr.mxu0 0.0
        %460 = vmatpush1.msra.mxu0 0.0
        %461 = vmatprep.subr.mxu0 0.0
        %462 = vmatpush1.msra.mxu0 0.0
        %463 = vmatprep.subr.mxu0 0.0
        %464 = vmatpush1.msra.mxu0 0.0
        %465 = vmatprep.mubr.f32.mxu0 0.0
        %466 = vmatmul.mubr.f32.gmra.mrb[0].mxu0 %v396
        %v467 = vpop.f32.mrb[0].mxu0
        %v468 = vadd.f32 0.0, %v467
        %v469 = vpop.f32.mrb[0].mxu0
        %470 = vmatprep.mubr.f32.mxu0 0.0
        %471 = vmatmul.mubr.f32.gmra.mrb[0].mxu0 %v399
        %v472 = vpop.f32.mrb[0].mxu0
        %v473 = vadd.f32 0.0, %v472
        %v474 = vpop.f32.mrb[0].mxu0
        %475 = vdwg.mxu0
        %476 = vst [vmem:[%s265] sm:$0xff] %v468
        %477 = vst [vmem:[%s265 + $0x8] sm:$0xff] %v473
        %s478 = sand.u32 %s109, 1
        %s479 = scalar_lea.sflag [#allocation4], %s478
        %s480 = sand.u32 %s109, 1
        %s481 = smul.addr %s480, 16
        %s482 = scalar_lea.vmem [#allocation8], %s481
        // Predicated region
        $region45: #{tpu_custom_call.1} parent=31 // pred_check
          %p483 = pneg %p119
        $region46: #{tpu_custom_call.1} parent=31 // pred_check_branch
          %485 = sbr.rel (%p483) target = $region48
        $region47: #{tpu_custom_call.1} parent=31 // pred_region
          %s487 = ssub.s32 256, 256
          %488 = vsyncadd %s479, %s487
          %s489 = smul.addr %s23, 2
          %s490 = smul.addr %s489, 128
          %s491 = scalar_lea.hbm %s3, %s490
          %s492 = sshll.u32 %s482, 4
          %s493 = int_to_ptr.vmem [resolvable:$true] %s492
          %498 = dma.vmem_to_hbm [thread:$0]  %s493, 256, %s491, %s479, 128, 128, 8
        $region48: #{tpu_custom_call.1} parent=31 // pred_fallthru
          _
      $region32: #{tpu_custom_call.1} parent=5 // pred_fallthru
        _
      %p499 = scmp.le.s32.totalorder 2, %s18
      // Predicated region
      $region49: #{tpu_custom_call.1} parent=5 // pred_check
        %p500 = pneg %p499
      $region50: #{tpu_custom_call.1} parent=5 // pred_check_branch
        %502 = sbr.rel (%p500) target = $region52
      $region51: #{tpu_custom_call.1} parent=5 // pred_region
        %s503 = ssub.s32 %s18, 2
        // Predicated region
        $region53: #{tpu_custom_call.1} parent=51 // pred_check
          %p504 = pneg %p125
        $region54: #{tpu_custom_call.1} parent=51 // pred_check_branch
          %506 = sbr.rel (%p504) target = $region56
        $region55: #{tpu_custom_call.1} parent=51 // pred_region
          %s507 = sand.u32 %s110, 1
          %s508 = scalar_lea.sflag [#allocation4], %s507
          %s509 = sand.u32 %s110, 1
          %s510 = smul.addr %s509, 16
          %s511 = scalar_lea.vmem [#allocation8], %s510
          %512 = dma.done %s508, 256
        $region56: #{tpu_custom_call.1} parent=51 // pred_fallthru
          _
      $region52: #{tpu_custom_call.1} parent=5 // pred_fallthru
        _
    $region6: #{tpu_custom_call.1} parent=1 // loop_footer
      %s22 = sadd.s32 1, %s18
    $region7: #{tpu_custom_call.1} parent=1 // loop_footer_branch
      %17 = sbr.rel target = $region3
    $region8: #{tpu_custom_call.1} parent=1 // loop_exit
      _
    %513 = vsyncpa [#allocation3], 1
    %s514 = scalar_lea.sflag [#allocation3], 1
    %515 = vsyncpa %s514, 1
    %516 = vsyncpa [#allocation6], 1
    %s517 = scalar_lea.sflag [#allocation6], 1
    %518 = vsyncpa %s517, 1
    %519 = vsyncpa [#allocation4], 1
    %s520 = scalar_lea.sflag [#allocation4], 1
    %521 = vsyncpa %s520, 1

</llo_original>
